<compile_context>
chip_gen: v5e
topology: v5e:2x2
jax: 0.10.0
libtpu: 0.0.40
codegen_flags: <defaults>
</compile_context>

<pallas_src>
import math

import jax
import jax.numpy as jnp
from jax import lax
from jax.experimental import pallas as pl
from jax.experimental.pallas import tpu as pltpu

LANES = 128
SUBLANES = 8

# Accumulator channel indices in the (num_splits, 7, 8, 128) partials output.
_SUM_P, _SUM_T, _SUM_PT, _MIN_P, _MAX_P, _MIN_T, _MAX_T = range(7)
_NUM_ACC = 7


def _round_up(x, m):
    return ((x + m - 1) // m) * m


def _vmem_capacity_bytes():
    try:
        info = pltpu.get_tpu_info()
        cap = getattr(info, "vmem_capacity_bytes", None)
        if cap:
            return int(cap)
    except Exception:
        pass
    return 64 * 1024 * 1024  # conservative (v7x-sized) fallback


def _make_dice_kernel(block_rows, tiles_per_split, n, needs_tail):
    """Build a kernel specialized on the static tiling / element count."""
    n_full_rows = n // LANES   # rows that are entirely valid
    n_rem = n % LANES          # valid lanes in row `n_full_rows`
    nvreg = block_rows // SUBLANES

    def kernel(pred_ref, true_ref, acc_ref):
        i = pl.program_id(1)

        @pl.when(i == 0)
        def _init():
            zeros = jnp.zeros((SUBLANES, LANES), jnp.float32)
            pos_inf = jnp.full((SUBLANES, LANES), jnp.inf, jnp.float32)
            neg_inf = jnp.full((SUBLANES, LANES), -jnp.inf, jnp.float32)
            acc_ref[_SUM_P] = zeros
            acc_ref[_SUM_T] = zeros
            acc_ref[_SUM_PT] = zeros
            acc_ref[_MIN_P] = pos_inf
            acc_ref[_MAX_P] = neg_inf
            acc_ref[_MIN_T] = pos_inf
            acc_ref[_MAX_T] = neg_inf

        # Per-tile cast to f32 in VMEM (keeps HBM traffic at native width).
        p = pred_ref[...].astype(jnp.float32)
        t = true_ref[...].astype(jnp.float32)

        def fold(x):
            # (block_rows, 128) -> (nvreg, 8, 128): the leading axis indexes
            # whole vregs, so axis-0 reductions are pure element-wise VPU adds
            # (no per-tile XLU cross-lane trees).
            return x.reshape(nvreg, SUBLANES, LANES)

        def accumulate(p_sum, t_sum, pt_sum, p_lo, p_hi, t_lo, t_hi):
            acc_ref[_SUM_P] += jnp.sum(fold(p_sum), axis=0)
            acc_ref[_SUM_T] += jnp.sum(fold(t_sum), axis=0)
            acc_ref[_SUM_PT] += jnp.sum(fold(pt_sum), axis=0)
            acc_ref[_MIN_P] = jnp.minimum(acc_ref[_MIN_P],
                                          jnp.min(fold(p_lo), axis=0))
            acc_ref[_MAX_P] = jnp.maximum(acc_ref[_MAX_P],
                                          jnp.max(fold(p_hi), axis=0))
            acc_ref[_MIN_T] = jnp.minimum(acc_ref[_MIN_T],
                                          jnp.min(fold(t_lo), axis=0))
            acc_ref[_MAX_T] = jnp.maximum(acc_ref[_MAX_T],
                                          jnp.max(fold(t_hi), axis=0))

        if not needs_tail:
            # Aligned shape: every block is full and valid -> no branch,
            # no iota/mask code is even compiled.
            accumulate(p, t, p * t, p, p, t, t)
        else:
            s = pl.program_id(0)
            gidx = s * tiles_per_split + i            # unclamped global tile
            is_tail = (gidx + 1) * block_rows > n_full_rows

            @pl.when(jnp.logical_not(is_tail))
            def _full_tile():
                accumulate(p, t, p * t, p, p, t, t)

            @pl.when(is_tail)
            def _tail_tile():
                # Mask wrapper-padded / Pallas-OOB / redundant(clamped) block
                # elements. (row, lane) index math keeps everything in int32.
                row0 = gidx * block_rows
                grow = row0 + lax.broadcasted_iota(
                    jnp.int32, (block_rows, LANES), 0)
                lane = lax.broadcasted_iota(
                    jnp.int32, (block_rows, LANES), 1)
                mask = (grow < n_full_rows) | (
                    (grow == n_full_rows) & (lane < n_rem))
                inf = jnp.float32(jnp.inf)
                zero = jnp.float32(0.0)
                accumulate(jnp.where(mask, p, zero),
                           jnp.where(mask, t, zero),
                           jnp.where(mask, p * t, zero),
                           jnp.where(mask, p, inf),
                           jnp.where(mask, p, -inf),
                           jnp.where(mask, t, inf),
                           jnp.where(mask, t, -inf))

    return kernel


def dice(y_pred, y_true, smooth=1.0, *, max_block_rows=None):
    """Returns (dice_loss, dice_score) as float32 scalars."""
    assert y_pred.shape == y_true.shape
    n = math.prod(y_pred.shape)
    assert n > 0, "dice() requires non-empty inputs"

    # Ravel is free for contiguous inputs; keep native dtype.
    pflat = jnp.ravel(y_pred)
    tflat = jnp.ravel(y_true)

    # Only pad when the element count is not a multiple of the 128-lane width
    # (rare for segmentation shapes). Ragged rows / ragged tiles are handled
    # by Pallas OOB block padding + the in-kernel mask, so the common aligned
    # case never pays an extra HBM copy.
    pad = (-n) % LANES
    if pad:
        pflat = jnp.pad(pflat, (0, pad))
        tflat = jnp.pad(tflat, (0, pad))
    rows = (n + pad) // LANES

    itemsize = max(pflat.dtype.itemsize, tflat.dtype.itemsize)

    # Generation-aware block size: ~1/8 of VMEM per input block (so
    # 2 inputs x 2 pipeline buffers stay within ~half of VMEM), capped at
    # 16 MiB per block.
    vmem_cap = _vmem_capacity_bytes()
    block_bytes = min(vmem_cap // 8, 16 * 1024 * 1024)
    cap_rows = max(SUBLANES,
                   (block_bytes // (LANES * itemsize)) // SUBLANES * SUBLANES)
    if max_block_rows is not None:
        cap_rows = min(cap_rows,
                       max(SUBLANES, (max_block_rows // SUBLANES) * SUBLANES))
    block_rows = min(cap_rows, _round_up(rows, SUBLANES))

    total_tiles = -(-rows // block_rows)
    # 2-way split over the outer "parallel" axis: uses both TensorCores on
    # v7x; harmless sequential iteration on v5e/v6e.
    num_splits = min(2, total_tiles)
    tiles_per_split = -(-total_tiles // num_splits)

    needs_tail = not (n % (block_rows * LANES) == 0
                      and total_tiles % num_splits == 0)

    pf = pflat.reshape(rows, LANES)
    tf = tflat.reshape(rows, LANES)

    kernel = _make_dice_kernel(block_rows, tiles_per_split, n, needs_tail)

    def in_map(s, i):
        # Clamp so no block index points entirely past the array (redundant
        # clamped blocks are fully masked in the kernel's tail path).
        return (jnp.minimum(s * tiles_per_split + i, total_tiles - 1), 0)

    needed_vmem = (2 * 2 * block_rows * LANES * itemsize
                   + num_splits * _NUM_ACC * SUBLANES * LANES * 4
                   + 4 * 1024 * 1024)
    vmem_limit = int(min(vmem_cap - 2 * 1024 * 1024,
                         max(needed_vmem, 32 * 1024 * 1024)))

    partials = pl.pallas_call(
        kernel,
        out_shape=jax.ShapeDtypeStruct(
            (num_splits, _NUM_ACC, SUBLANES, LANES), jnp.float32),
        grid=(num_splits, tiles_per_split),
        in_specs=[
            pl.BlockSpec((block_rows, LANES), in_map),   # y_pred tile
            pl.BlockSpec((block_rows, LANES), in_map),   # y_true tile
        ],
        out_specs=pl.BlockSpec((None, _NUM_ACC, SUBLANES, LANES),
                               lambda s, i: (s, 0, 0, 0)),
        compiler_params=pltpu.CompilerParams(
            dimension_semantics=("parallel", "arbitrary"),
            vmem_limit_bytes=vmem_limit,
        ),
    )(pf, tf)

    # Tiny final combine + closed-form normalized dice, done in plain JAX so
    # the per-core partials need no in-kernel cross-core synchronization.
    sum_p = jnp.sum(partials[:, _SUM_P])
    sum_t = jnp.sum(partials[:, _SUM_T])
    sum_pt = jnp.sum(partials[:, _SUM_PT])
    p_min = jnp.min(partials[:, _MIN_P])
    p_max = jnp.max(partials[:, _MAX_P])
    t_min = jnp.min(partials[:, _MIN_T])
    t_max = jnp.max(partials[:, _MAX_T])

    nf = jnp.float32(n)
    smooth = jnp.float32(smooth)
    # Closed-form sums of the min-max-normalized tensors:
    #   pn = (p - p_min)/(p_max - p_min), tn likewise.
    inv_p = 1.0 / (p_max - p_min)
    inv_t = 1.0 / (t_max - t_min)
    sum_pn = (sum_p - nf * p_min) * inv_p
    sum_tn = (sum_t - nf * t_min) * inv_t
    intersection = (sum_pt - t_min * sum_p - p_min * sum_t
                    + nf * p_min * t_min) * (inv_p * inv_t)
    union = sum_pn + sum_tn

    score = (2.0 * intersection + smooth) / (union + smooth)
    loss = 1.0 - score
    return loss, score


def _dice_ref(y_pred, y_true, smooth=1.0):
    y_pred = y_pred.astype(jnp.float32)
    y_true = y_true.astype(jnp.float32)
    y_pred = (y_pred - jnp.min(y_pred)) / (jnp.max(y_pred) - jnp.min(y_pred))
    y_true = (y_true - jnp.min(y_true)) / (jnp.max(y_true) - jnp.min(y_true))
    inter = jnp.sum(y_true * y_pred)
    union = jnp.sum(y_true + y_pred)
    score = (2.0 * inter + smooth) / (union + smooth)
    return 1.0 - score, score


def _check(shape, key, atol, rtol, max_block_rows=None):
    k1, k2 = jax.random.split(key)
    y_pred = jax.random.normal(k1, shape, dtype=jnp.float32)
    y_true = (jax.random.uniform(k2, shape, dtype=jnp.float32) > 0.5
              ).astype(jnp.float32)
    loss, score = dice(y_pred, y_true, smooth=1.0,
                       max_block_rows=max_block_rows)
    jax.block_until_ready((loss, score))
    ref_loss, ref_score = _dice_ref(y_pred, y_true, smooth=1.0)
    assert jnp.allclose(loss, ref_loss, atol=atol, rtol=rtol), (
        shape, loss, ref_loss)
    assert jnp.allclose(score, ref_score, atol=atol, rtol=rtol), (
        shape, score, ref_score)


if __name__ == "__main__":
    key = jax.random.PRNGKey(0)
    k1, k2, k3, k4 = jax.random.split(key, 4)

    # Primary small NCHW example consistent with the segmentation use-case
    # (aligned -> tail-free specialized kernel, single tile).
    _check((2, 4, 16, 16), k1, atol=1e-5, rtol=1e-5)
    # Ragged element count -> exercises the masked tail path (and lane pad).
    _check((2, 3, 5, 7), k2, atol=1e-5, rtol=1e-5)
    # Multi-tile, 2-split streaming with an odd tile count -> exercises the
    # clamped/redundant block + tail masking across splits.
    _check((2, 4, 192, 192), k3, atol=1e-5, rtol=1e-4, max_block_rows=256)
    # Multi-tile, 2-split, fully aligned -> exercises the tail-free
    # specialized kernel with the parallel outer axis.
    _check((2, 4, 128, 128), k4, atol=1e-5, rtol=1e-4, max_block_rows=256)

    print("KERNEL_OK")
</pallas_src>

<mosaic_0001>
module attributes {stable_mosaic.version = 11 : i64} {
  func.func @kernel(%arg0: i32, %arg1: i32, %arg2: memref<16x128xf32, #tpu.memory_space<vmem>>, %arg3: memref<16x128xf32, #tpu.memory_space<vmem>>, %arg4: memref<1x7x8x128xf32, #tpu.memory_space<vmem>>) attributes {dimension_semantics = [#tpu.dimension_semantics<parallel>, #tpu.dimension_semantics<arbitrary>], iteration_bounds = array<i64: 1, 1>, scalar_prefetch = 0 : i64, scratch_operands = 0 : i64, tpu.core_type = #tpu.core_type<tc>, window_params = [{transform_indices = @transform_0, window_bounds = array<i64: 16, 128>}, {transform_indices = @transform_1, window_bounds = array<i64: 16, 128>}, {transform_indices = @transform_2, window_bounds = array<i64: 1, 7, 8, 128>}]} {
    %c0_i32 = arith.constant 0 : i32
    %0 = arith.cmpi eq, %arg1, %c0_i32 : i32
    %1 = arith.extui %0 : i1 to i32
    %c0_i32_0 = arith.constant 0 : i32
    %2 = arith.cmpi ne, %1, %c0_i32_0 : i32
    scf.if %2 {
      %cst_60 = arith.constant 0.000000e+00 : f32
      %62 = vector.broadcast %cst_60 : f32 to vector<8x128xf32>
      %cst_61 = arith.constant 0x7F800000 : f32
      %63 = vector.broadcast %cst_61 : f32 to vector<8x128xf32>
      %cst_62 = arith.constant 0xFF800000 : f32
      %64 = vector.broadcast %cst_62 : f32 to vector<8x128xf32>
      %c0_63 = arith.constant 0 : index
      %c0_64 = arith.constant 0 : index
      %c0_65 = arith.constant 0 : index
      %c0_66 = arith.constant 0 : index
      %65 = vector.load %arg4[%c0_63, %c0_64, %c0_65, %c0_66] : memref<1x7x8x128xf32, #tpu.memory_space<vmem>>, vector<1x1x8x128xf32>
      %66 = vector.shape_cast %65 : vector<1x1x8x128xf32> to vector<8x128xf32>
      %67 = vector.shape_cast %62 : vector<8x128xf32> to vector<1x1x8x128xf32>
      tpu.vector_store %arg4[%c0_63, %c0_64, %c0_65, %c0_66], %67 {strides = array<i32>} : memref<1x7x8x128xf32, #tpu.memory_space<vmem>>, vector<1x1x8x128xf32>,
      %c0_67 = arith.constant 0 : index
      %c1_68 = arith.constant 1 : index
      %c0_69 = arith.constant 0 : index
      %c0_70 = arith.constant 0 : index
      %68 = vector.load %arg4[%c0_67, %c1_68, %c0_69, %c0_70] : memref<1x7x8x128xf32, #tpu.memory_space<vmem>>, vector<1x1x8x128xf32>
      %69 = vector.shape_cast %68 : vector<1x1x8x128xf32> to vector<8x128xf32>
      %70 = vector.shape_cast %62 : vector<8x128xf32> to vector<1x1x8x128xf32>
      tpu.vector_store %arg4[%c0_67, %c1_68, %c0_69, %c0_70], %70 {strides = array<i32>} : memref<1x7x8x128xf32, #tpu.memory_space<vmem>>, vector<1x1x8x128xf32>,
      %c0_71 = arith.constant 0 : index
      %c2_72 = arith.constant 2 : index
      %c0_73 = arith.constant 0 : index
      %c0_74 = arith.constant 0 : index
      %71 = vector.load %arg4[%c0_71, %c2_72, %c0_73, %c0_74] : memref<1x7x8x128xf32, #tpu.memory_space<vmem>>, vector<1x1x8x128xf32>
      %72 = vector.shape_cast %71 : vector<1x1x8x128xf32> to vector<8x128xf32>
      %73 = vector.shape_cast %62 : vector<8x128xf32> to vector<1x1x8x128xf32>
      tpu.vector_store %arg4[%c0_71, %c2_72, %c0_73, %c0_74], %73 {strides = array<i32>} : memref<1x7x8x128xf32, #tpu.memory_space<vmem>>, vector<1x1x8x128xf32>,
      %c0_75 = arith.constant 0 : index
      %c3_76 = arith.constant 3 : index
      %c0_77 = arith.constant 0 : index
      %c0_78 = arith.constant 0 : index
      %74 = vector.load %arg4[%c0_75, %c3_76, %c0_77, %c0_78] : memref<1x7x8x128xf32, #tpu.memory_space<vmem>>, vector<1x1x8x128xf32>
      %75 = vector.shape_cast %74 : vector<1x1x8x128xf32> to vector<8x128xf32>
      %76 = vector.shape_cast %63 : vector<8x128xf32> to vector<1x1x8x128xf32>
      tpu.vector_store %arg4[%c0_75, %c3_76, %c0_77, %c0_78], %76 {strides = array<i32>} : memref<1x7x8x128xf32, #tpu.memory_space<vmem>>, vector<1x1x8x128xf32>,
      %c0_79 = arith.constant 0 : index
      %c4_80 = arith.constant 4 : index
      %c0_81 = arith.constant 0 : index
      %c0_82 = arith.constant 0 : index
      %77 = vector.load %arg4[%c0_79, %c4_80, %c0_81, %c0_82] : memref<1x7x8x128xf32, #tpu.memory_space<vmem>>, vector<1x1x8x128xf32>
      %78 = vector.shape_cast %77 : vector<1x1x8x128xf32> to vector<8x128xf32>
      %79 = vector.shape_cast %64 : vector<8x128xf32> to vector<1x1x8x128xf32>
      tpu.vector_store %arg4[%c0_79, %c4_80, %c0_81, %c0_82], %79 {strides = array<i32>} : memref<1x7x8x128xf32, #tpu.memory_space<vmem>>, vector<1x1x8x128xf32>,
      %c0_83 = arith.constant 0 : index
      %c5_84 = arith.constant 5 : index
      %c0_85 = arith.constant 0 : index
      %c0_86 = arith.constant 0 : index
      %80 = vector.load %arg4[%c0_83, %c5_84, %c0_85, %c0_86] : memref<1x7x8x128xf32, #tpu.memory_space<vmem>>, vector<1x1x8x128xf32>
      %81 = vector.shape_cast %80 : vector<1x1x8x128xf32> to vector<8x128xf32>
      %82 = vector.shape_cast %63 : vector<8x128xf32> to vector<1x1x8x128xf32>
      tpu.vector_store %arg4[%c0_83, %c5_84, %c0_85, %c0_86], %82 {strides = array<i32>} : memref<1x7x8x128xf32, #tpu.memory_space<vmem>>, vector<1x1x8x128xf32>,
      %c0_87 = arith.constant 0 : index
      %c6_88 = arith.constant 6 : index
      %c0_89 = arith.constant 0 : index
      %c0_90 = arith.constant 0 : index
      %83 = vector.load %arg4[%c0_87, %c6_88, %c0_89, %c0_90] : memref<1x7x8x128xf32, #tpu.memory_space<vmem>>, vector<1x1x8x128xf32>
      %84 = vector.shape_cast %83 : vector<1x1x8x128xf32> to vector<8x128xf32>
      %85 = vector.shape_cast %64 : vector<8x128xf32> to vector<1x1x8x128xf32>
      tpu.vector_store %arg4[%c0_87, %c6_88, %c0_89, %c0_90], %85 {strides = array<i32>} : memref<1x7x8x128xf32, #tpu.memory_space<vmem>>, vector<1x1x8x128xf32>,
    } else {
    }
    %c0 = arith.constant 0 : index
    %c0_1 = arith.constant 0 : index
    %3 = vector.load %arg2[%c0, %c0_1] : memref<16x128xf32, #tpu.memory_space<vmem>>, vector<16x128xf32>
    %c0_2 = arith.constant 0 : index
    %c0_3 = arith.constant 0 : index
    %4 = vector.load %arg3[%c0_2, %c0_3] : memref<16x128xf32, #tpu.memory_space<vmem>>, vector<16x128xf32>
    %5 = arith.mulf %3, %4 : vector<16x128xf32>
    %c0_4 = arith.constant 0 : index
    %c0_5 = arith.constant 0 : index
    %c0_6 = arith.constant 0 : index
    %c0_7 = arith.constant 0 : index
    %6 = vector.load %arg4[%c0_4, %c0_5, %c0_6, %c0_7] : memref<1x7x8x128xf32, #tpu.memory_space<vmem>>, vector<1x1x8x128xf32>
    %7 = vector.shape_cast %6 : vector<1x1x8x128xf32> to vector<8x128xf32>
    %8 = vector.shape_cast %3 : vector<16x128xf32> to vector<2x8x128xf32>
    %cst = arith.constant dense<0.000000e+00> : vector<8x128xf32>
    %9 = vector.multi_reduction <add>, %8, %cst [0] : vector<2x8x128xf32> to vector<8x128xf32>
    %10 = arith.addf %7, %9 : vector<8x128xf32>
    %c0_8 = arith.constant 0 : index
    %c0_9 = arith.constant 0 : index
    %c0_10 = arith.constant 0 : index
    %c0_11 = arith.constant 0 : index
    %11 = vector.load %arg4[%c0_8, %c0_9, %c0_10, %c0_11] : memref<1x7x8x128xf32, #tpu.memory_space<vmem>>, vector<1x1x8x128xf32>
    %12 = vector.shape_cast %11 : vector<1x1x8x128xf32> to vector<8x128xf32>
    %13 = vector.shape_cast %10 : vector<8x128xf32> to vector<1x1x8x128xf32>
    tpu.vector_store %arg4[%c0_8, %c0_9, %c0_10, %c0_11], %13 {strides = array<i32>} : memref<1x7x8x128xf32, #tpu.memory_space<vmem>>, vector<1x1x8x128xf32>,
    %c0_12 = arith.constant 0 : index
    %c1 = arith.constant 1 : index
    %c0_13 = arith.constant 0 : index
    %c0_14 = arith.constant 0 : index
    %14 = vector.load %arg4[%c0_12, %c1, %c0_13, %c0_14] : memref<1x7x8x128xf32, #tpu.memory_space<vmem>>, vector<1x1x8x128xf32>
    %15 = vector.shape_cast %14 : vector<1x1x8x128xf32> to vector<8x128xf32>
    %16 = vector.shape_cast %4 : vector<16x128xf32> to vector<2x8x128xf32>
    %cst_15 = arith.constant dense<0.000000e+00> : vector<8x128xf32>
    %17 = vector.multi_reduction <add>, %16, %cst_15 [0] : vector<2x8x128xf32> to vector<8x128xf32>
    %18 = arith.addf %15, %17 : vector<8x128xf32>
    %c0_16 = arith.constant 0 : index
    %c1_17 = arith.constant 1 : index
    %c0_18 = arith.constant 0 : index
    %c0_19 = arith.constant 0 : index
    %19 = vector.load %arg4[%c0_16, %c1_17, %c0_18, %c0_19] : memref<1x7x8x128xf32, #tpu.memory_space<vmem>>, vector<1x1x8x128xf32>
    %20 = vector.shape_cast %19 : vector<1x1x8x128xf32> to vector<8x128xf32>
    %21 = vector.shape_cast %18 : vector<8x128xf32> to vector<1x1x8x128xf32>
    tpu.vector_store %arg4[%c0_16, %c1_17, %c0_18, %c0_19], %21 {strides = array<i32>} : memref<1x7x8x128xf32, #tpu.memory_space<vmem>>, vector<1x1x8x128xf32>,
    %c0_20 = arith.constant 0 : index
    %c2 = arith.constant 2 : index
    %c0_21 = arith.constant 0 : index
    %c0_22 = arith.constant 0 : index
    %22 = vector.load %arg4[%c0_20, %c2, %c0_21, %c0_22] : memref<1x7x8x128xf32, #tpu.memory_space<vmem>>, vector<1x1x8x128xf32>
    %23 = vector.shape_cast %22 : vector<1x1x8x128xf32> to vector<8x128xf32>
    %24 = vector.shape_cast %5 : vector<16x128xf32> to vector<2x8x128xf32>
    %cst_23 = arith.constant dense<0.000000e+00> : vector<8x128xf32>
    %25 = vector.multi_reduction <add>, %24, %cst_23 [0] : vector<2x8x128xf32> to vector<8x128xf32>
    %26 = arith.addf %23, %25 : vector<8x128xf32>
    %c0_24 = arith.constant 0 : index
    %c2_25 = arith.constant 2 : index
    %c0_26 = arith.constant 0 : index
    %c0_27 = arith.constant 0 : index
    %27 = vector.load %arg4[%c0_24, %c2_25, %c0_26, %c0_27] : memref<1x7x8x128xf32, #tpu.memory_space<vmem>>, vector<1x1x8x128xf32>
    %28 = vector.shape_cast %27 : vector<1x1x8x128xf32> to vector<8x128xf32>
    %29 = vector.shape_cast %26 : vector<8x128xf32> to vector<1x1x8x128xf32>
    tpu.vector_store %arg4[%c0_24, %c2_25, %c0_26, %c0_27], %29 {strides = array<i32>} : memref<1x7x8x128xf32, #tpu.memory_space<vmem>>, vector<1x1x8x128xf32>,
    %c0_28 = arith.constant 0 : index
    %c3 = arith.constant 3 : index
    %c0_29 = arith.constant 0 : index
    %c0_30 = arith.constant 0 : index
    %30 = vector.load %arg4[%c0_28, %c3, %c0_29, %c0_30] : memref<1x7x8x128xf32, #tpu.memory_space<vmem>>, vector<1x1x8x128xf32>
    %31 = vector.shape_cast %30 : vector<1x1x8x128xf32> to vector<8x128xf32>
    %32 = vector.shape_cast %3 : vector<16x128xf32> to vector<2x8x128xf32>
    %cst_31 = arith.constant dense<0x7F800000> : vector<8x128xf32>
    %33 = vector.multi_reduction <minimumf>, %32, %cst_31 [0] : vector<2x8x128xf32> to vector<8x128xf32>
    %34 = arith.minimumf %31, %33 : vector<8x128xf32>
    %c0_32 = arith.constant 0 : index
    %c3_33 = arith.constant 3 : index
    %c0_34 = arith.constant 0 : index
    %c0_35 = arith.constant 0 : index
    %35 = vector.load %arg4[%c0_32, %c3_33, %c0_34, %c0_35] : memref<1x7x8x128xf32, #tpu.memory_space<vmem>>, vector<1x1x8x128xf32>
    %36 = vector.shape_cast %35 : vector<1x1x8x128xf32> to vector<8x128xf32>
    %37 = vector.shape_cast %34 : vector<8x128xf32> to vector<1x1x8x128xf32>
    tpu.vector_store %arg4[%c0_32, %c3_33, %c0_34, %c0_35], %37 {strides = array<i32>} : memref<1x7x8x128xf32, #tpu.memory_space<vmem>>, vector<1x1x8x128xf32>,
    %c0_36 = arith.constant 0 : index
    %c4 = arith.constant 4 : index
    %c0_37 = arith.constant 0 : index
    %c0_38 = arith.constant 0 : index
    %38 = vector.load %arg4[%c0_36, %c4, %c0_37, %c0_38] : memref<1x7x8x128xf32, #tpu.memory_space<vmem>>, vector<1x1x8x128xf32>
    %39 = vector.shape_cast %38 : vector<1x1x8x128xf32> to vector<8x128xf32>
    %40 = vector.shape_cast %3 : vector<16x128xf32> to vector<2x8x128xf32>
    %cst_39 = arith.constant dense<0xFF800000> : vector<8x128xf32>
    %41 = vector.multi_reduction <maximumf>, %40, %cst_39 [0] : vector<2x8x128xf32> to vector<8x128xf32>
    %42 = arith.maximumf %39, %41 : vector<8x128xf32>
    %c0_40 = arith.constant 0 : index
    %c4_41 = arith.constant 4 : index
    %c0_42 = arith.constant 0 : index
    %c0_43 = arith.constant 0 : index
    %43 = vector.load %arg4[%c0_40, %c4_41, %c0_42, %c0_43] : memref<1x7x8x128xf32, #tpu.memory_space<vmem>>, vector<1x1x8x128xf32>
    %44 = vector.shape_cast %43 : vector<1x1x8x128xf32> to vector<8x128xf32>
    %45 = vector.shape_cast %42 : vector<8x128xf32> to vector<1x1x8x128xf32>
    tpu.vector_store %arg4[%c0_40, %c4_41, %c0_42, %c0_43], %45 {strides = array<i32>} : memref<1x7x8x128xf32, #tpu.memory_space<vmem>>, vector<1x1x8x128xf32>,
    %c0_44 = arith.constant 0 : index
    %c5 = arith.constant 5 : index
    %c0_45 = arith.constant 0 : index
    %c0_46 = arith.constant 0 : index
    %46 = vector.load %arg4[%c0_44, %c5, %c0_45, %c0_46] : memref<1x7x8x128xf32, #tpu.memory_space<vmem>>, vector<1x1x8x128xf32>
    %47 = vector.shape_cast %46 : vector<1x1x8x128xf32> to vector<8x128xf32>
    %48 = vector.shape_cast %4 : vector<16x128xf32> to vector<2x8x128xf32>
    %cst_47 = arith.constant dense<0x7F800000> : vector<8x128xf32>
    %49 = vector.multi_reduction <minimumf>, %48, %cst_47 [0] : vector<2x8x128xf32> to vector<8x128xf32>
    %50 = arith.minimumf %47, %49 : vector<8x128xf32>
    %c0_48 = arith.constant 0 : index
    %c5_49 = arith.constant 5 : index
    %c0_50 = arith.constant 0 : index
    %c0_51 = arith.constant 0 : index
    %51 = vector.load %arg4[%c0_48, %c5_49, %c0_50, %c0_51] : memref<1x7x8x128xf32, #tpu.memory_space<vmem>>, vector<1x1x8x128xf32>
    %52 = vector.shape_cast %51 : vector<1x1x8x128xf32> to vector<8x128xf32>
    %53 = vector.shape_cast %50 : vector<8x128xf32> to vector<1x1x8x128xf32>
    tpu.vector_store %arg4[%c0_48, %c5_49, %c0_50, %c0_51], %53 {strides = array<i32>} : memref<1x7x8x128xf32, #tpu.memory_space<vmem>>, vector<1x1x8x128xf32>,
    %c0_52 = arith.constant 0 : index
    %c6 = arith.constant 6 : index
    %c0_53 = arith.constant 0 : index
    %c0_54 = arith.constant 0 : index
    %54 = vector.load %arg4[%c0_52, %c6, %c0_53, %c0_54] : memref<1x7x8x128xf32, #tpu.memory_space<vmem>>, vector<1x1x8x128xf32>
    %55 = vector.shape_cast %54 : vector<1x1x8x128xf32> to vector<8x128xf32>
    %56 = vector.shape_cast %4 : vector<16x128xf32> to vector<2x8x128xf32>
    %cst_55 = arith.constant dense<0xFF800000> : vector<8x128xf32>
    %57 = vector.multi_reduction <maximumf>, %56, %cst_55 [0] : vector<2x8x128xf32> to vector<8x128xf32>
    %58 = arith.maximumf %55, %57 : vector<8x128xf32>
    %c0_56 = arith.constant 0 : index
    %c6_57 = arith.constant 6 : index
    %c0_58 = arith.constant 0 : index
    %c0_59 = arith.constant 0 : index
    %59 = vector.load %arg4[%c0_56, %c6_57, %c0_58, %c0_59] : memref<1x7x8x128xf32, #tpu.memory_space<vmem>>, vector<1x1x8x128xf32>
    %60 = vector.shape_cast %59 : vector<1x1x8x128xf32> to vector<8x128xf32>
    %61 = vector.shape_cast %58 : vector<8x128xf32> to vector<1x1x8x128xf32>
    tpu.vector_store %arg4[%c0_56, %c6_57, %c0_58, %c0_59], %61 {strides = array<i32>} : memref<1x7x8x128xf32, #tpu.memory_space<vmem>>, vector<1x1x8x128xf32>,
    return
  }
  func.func @transform_0(%arg0: i32, %arg1: i32) -> (i32, i32) {
    %c1_i32 = arith.constant 1 : i32
    %0 = arith.muli %arg0, %c1_i32 : i32
    %1 = arith.addi %0, %arg1 : i32
    %c0_i32 = arith.constant 0 : i32
    %2 = arith.minsi %1, %c0_i32 : i32
    %c0_i32_0 = arith.constant 0 : i32
    %c0_i32_1 = arith.constant 0 : i32
    return %2, %c0_i32_0 : i32, i32
  }
  func.func @transform_1(%arg0: i32, %arg1: i32) -> (i32, i32) {
    %c1_i32 = arith.constant 1 : i32
    %0 = arith.muli %arg0, %c1_i32 : i32
    %1 = arith.addi %0, %arg1 : i32
    %c0_i32 = arith.constant 0 : i32
    %2 = arith.minsi %1, %c0_i32 : i32
    %c0_i32_0 = arith.constant 0 : i32
    %c0_i32_1 = arith.constant 0 : i32
    return %2, %c0_i32_0 : i32, i32
  }
  func.func @transform_2(%arg0: i32, %arg1: i32) -> (i32, i32, i32, i32) {
    %c0_i32 = arith.constant 0 : i32
    %c0_i32_0 = arith.constant 0 : i32
    %c0_i32_1 = arith.constant 0 : i32
    %c0_i32_2 = arith.constant 0 : i32
    return %arg0, %c0_i32, %c0_i32_0, %c0_i32_1 : i32, i32, i32, i32
  }
}

</mosaic_0001>

<llo_original>
// kernel: tpu_custom_call.1
$region0: #{tpu_custom_call.1}
  #allocation0 [shape = 'u32[]', space=smem, size = 0x4, offset = 0x4, fixed_abs, tag = 'smem constant byte address 0x4 - core index']
  #allocation1 [shape = 'u32[72,128]{1,0:T(1,128)}', space=vmem, size = 0x9000, scoped, tag = 'internal scratch']
  %s0 = inlined_call_operand.hbm [shape: f32[16,128], index: 0, kind: input, shape index: {}]
  %s1 = inlined_call_operand.hbm [shape: f32[16,128], index: 1, kind: input, shape index: {}]
  %s2 = inlined_call_operand.hbm [shape: f32[1,7,8,128], index: 2, kind: output, shape index: {}]
  %s3 = sld [smem:[#allocation0]]
  $region30: #{tpu_custom_call.1} parent=0
    _
  %s5 = ssub.s32 1, %s3
  %s6 = scalar_select 0, %s5, %s3
  $region1: #{tpu_custom_call.1} parent=0
    #allocation2 [shape = 'u8[8192]{0}', space=vmem, size = 0x2000, scoped, tag = 'input window, operand 0, single buffered']
    #allocation3 [shape = 's32[1]{0}', space=sflag, size = 0x4, scoped, tag = 'scoped memory for tpu_custom_call.1']
    #allocation4 [shape = 's32[1]{0}', space=sflag, size = 0x4, scoped, tag = 'scoped memory for tpu_custom_call.1']
    #allocation5 [shape = 'u8[8192]{0}', space=vmem, size = 0x2000, scoped, tag = 'input window, operand 1, single buffered']
    #allocation6 [shape = 's32[1]{0}', space=sflag, size = 0x4, scoped, tag = 'scoped memory for tpu_custom_call.1']
    #allocation7 [shape = 'u8[28672]{0}', space=vmem, size = 0x7000, scoped, tag = 'output window, operand 0, single buffered']
    %7 = vsyncpa [#allocation3], 0
    %8 = vsyncpa [#allocation6], 0
    %9 = vsyncpa [#allocation4], 0
    // Predicated region
    $region2: #{tpu_custom_call.1} parent=1 // pred_check
      _
    $region3: #{tpu_custom_call.1} parent=1 // pred_check_branch
      %11 = sbr.rel (0) target = $region5
    $region4: #{tpu_custom_call.1} parent=1 // pred_region
      %s12 = sadd.s32 0, 0
      %p13 = scmp.lt.s32.totalorder %s12, 0
      %s14 = scalar_select %p13, %s12, 0
      %s15 = smul.u32 2, %s14
      %17 = vsyncadd [#allocation3], 0
      %s18 = smul.addr %s15, 8
      %s19 = scalar_lea.hbm %s0, %s18
      %s20 = sshll.u32 %s19, 4
      %s21 = int_to_ptr.hbm [resolvable:$true] %s20
      %s22 = sshll.u32 [#allocation2], 4
      %s23 = int_to_ptr.vmem [resolvable:$true] %s22
      %28 = dma.hbm_to_vmem [thread:$0]  %s21, 256, %s23, [#allocation3], 128, 128, 8
    $region5: #{tpu_custom_call.1} parent=1 // pred_fallthru
      _
    // Predicated region
    $region6: #{tpu_custom_call.1} parent=1 // pred_check
      _
    $region7: #{tpu_custom_call.1} parent=1 // pred_check_branch
      %30 = sbr.rel (0) target = $region9
    $region8: #{tpu_custom_call.1} parent=1 // pred_region
      %s31 = sadd.s32 0, 0
      %p32 = scmp.lt.s32.totalorder %s31, 0
      %s33 = scalar_select %p32, %s31, 0
      %s34 = smul.u32 2, %s33
      %36 = vsyncadd [#allocation6], 0
      %s37 = smul.addr %s34, 8
      %s38 = scalar_lea.hbm %s1, %s37
      %s39 = sshll.u32 %s38, 4
      %s40 = int_to_ptr.hbm [resolvable:$true] %s39
      %s41 = sshll.u32 [#allocation5], 4
      %s42 = int_to_ptr.vmem [resolvable:$true] %s41
      %47 = dma.hbm_to_vmem [thread:$0]  %s40, 256, %s42, [#allocation6], 128, 128, 8
    $region9: #{tpu_custom_call.1} parent=1 // pred_fallthru
      _
    // Predicated region
    $region10: #{tpu_custom_call.1} parent=1 // pred_check
      _
    $region11: #{tpu_custom_call.1} parent=1 // pred_check_branch
      %49 = sbr.rel (0) target = $region13
    $region12: #{tpu_custom_call.1} parent=1 // pred_region
      %51 = dma.done [#allocation3], 256
    $region13: #{tpu_custom_call.1} parent=1 // pred_fallthru
      _
    // Predicated region
    $region14: #{tpu_custom_call.1} parent=1 // pred_check
      _
    $region15: #{tpu_custom_call.1} parent=1 // pred_check_branch
      %53 = sbr.rel (0) target = $region17
    $region16: #{tpu_custom_call.1} parent=1 // pred_region
      %55 = dma.done [#allocation6], 256
    $region17: #{tpu_custom_call.1} parent=1 // pred_fallthru
      _
    %s56 = sadd.s32 0, 0
    %p57 = scmp.lt.s32.totalorder %s56, 0
    %s58 = scalar_select %p57, %s56, 0
    %s59 = smul.u32 2, %s58
    %s60 = sadd.s32 0, 0
    %p61 = scmp.lt.s32.totalorder %s60, 0
    %s62 = scalar_select %p61, %s60, 0
    %s63 = smul.u32 2, %s62
    %p64 = scmp.eq.s32.totalorder 0, 0
    // Predicated region
    $region18: #{tpu_custom_call.1} parent=1 // pred_check
      %p65 = pneg %p64
    $region19: #{tpu_custom_call.1} parent=1 // pred_check_branch
      %67 = sbr.rel (%p65) target = $region21
    $region20: #{tpu_custom_call.1} parent=1 // pred_region
      %68 = vst [vmem:[#allocation7] sm:$0xff] 0.0
      %s69 = scalar_lea.vmem [#allocation7], 8
      %70 = vst [vmem:[%s69] sm:$0xff] 0.0
      %s71 = scalar_lea.vmem [#allocation7], 16
      %72 = vst [vmem:[%s71] sm:$0xff] 0.0
      %s73 = scalar_lea.vmem [#allocation7], 24
      %74 = vst [vmem:[%s73] sm:$0xff] inf
      %s75 = scalar_lea.vmem [#allocation7], 32
      %76 = vst [vmem:[%s75] sm:$0xff] -inf
      %s77 = scalar_lea.vmem [#allocation7], 40
      %78 = vst [vmem:[%s77] sm:$0xff] inf
      %s79 = scalar_lea.vmem [#allocation7], 48
      %80 = vst [vmem:[%s79] sm:$0xff] -inf
    $region21: #{tpu_custom_call.1} parent=1 // pred_fallthru
      _
    %v81 = vld [vmem:[#allocation2] sm:$0xff]
    %v82 = vld [vmem:[#allocation2 + $0x8] sm:$0xff]
    %v83 = vld [vmem:[#allocation5] sm:$0xff]
    %v84 = vld [vmem:[#allocation5 + $0x8] sm:$0xff]
    %v85 = vmul.f32 %v81, %v83
    %v86 = vmul.f32 %v82, %v84
    %v87 = vld [vmem:[#allocation7] sm:$0xff]
    %v88 = vadd.f32 %v81, %v82
    %v89 = vadd.f32 %v87, %v88
    %90 = vst [vmem:[#allocation7] sm:$0xff] %v89
    %s91 = scalar_lea.vmem [#allocation7], 8
    %v92 = vld [vmem:[%s91] sm:$0xff]
    %v93 = vadd.f32 %v83, %v84
    %v94 = vadd.f32 %v92, %v93
    %95 = vst [vmem:[%s91] sm:$0xff] %v94
    %s96 = scalar_lea.vmem [#allocation7], 16
    %v97 = vld [vmem:[%s96] sm:$0xff]
    %v98 = vadd.f32 %v85, %v86
    %v99 = vadd.f32 %v97, %v98
    %100 = vst [vmem:[%s96] sm:$0xff] %v99
    %s101 = scalar_lea.vmem [#allocation7], 24
    %v102 = vld [vmem:[%s101] sm:$0xff]
    %v103 = vmin.f32 %v81, %v82
    %v104 = vmin.f32 %v102, %v103
    %105 = vst [vmem:[%s101] sm:$0xff] %v104
    %s106 = scalar_lea.vmem [#allocation7], 32
    %v107 = vld [vmem:[%s106] sm:$0xff]
    %v108 = vmax.f32 %v81, %v82
    %v109 = vmax.f32 %v107, %v108
    %110 = vst [vmem:[%s106] sm:$0xff] %v109
    %s111 = scalar_lea.vmem [#allocation7], 40
    %v112 = vld [vmem:[%s111] sm:$0xff]
    %v113 = vmin.f32 %v83, %v84
    %v114 = vmin.f32 %v112, %v113
    %115 = vst [vmem:[%s111] sm:$0xff] %v114
    %s116 = scalar_lea.vmem [#allocation7], 48
    %v117 = vld [vmem:[%s116] sm:$0xff]
    %v118 = vmax.f32 %v83, %v84
    %v119 = vmax.f32 %v117, %v118
    %120 = vst [vmem:[%s116] sm:$0xff] %v119
    // Predicated region
    $region22: #{tpu_custom_call.1} parent=1 // pred_check
      _
    $region23: #{tpu_custom_call.1} parent=1 // pred_check_branch
      %122 = sbr.rel (0) target = $region25
    $region24: #{tpu_custom_call.1} parent=1 // pred_region
      %124 = vsyncadd [#allocation4], 0
      %s125 = sshll.u32 [#allocation7], 4
      %s126 = int_to_ptr.vmem [resolvable:$true] %s125
      %s127 = sshll.u32 %s2, 4
      %s128 = int_to_ptr.hbm [resolvable:$true] %s127
      %133 = dma.vmem_to_hbm [thread:$0]  %s126, 896, %s128, [#allocation4], 128, 128, 8
    $region25: #{tpu_custom_call.1} parent=1 // pred_fallthru
      _
    // Predicated region
    $region26: #{tpu_custom_call.1} parent=1 // pred_check
      _
    $region27: #{tpu_custom_call.1} parent=1 // pred_check_branch
      %135 = sbr.rel (0) target = $region29
    $region28: #{tpu_custom_call.1} parent=1 // pred_region
      %137 = dma.done [#allocation4], 896
    $region29: #{tpu_custom_call.1} parent=1 // pred_fallthru
      _
    %138 = vsyncpa [#allocation3], 1
    %139 = vsyncpa [#allocation6], 1
    %140 = vsyncpa [#allocation4], 1

</llo_original>
